<compile_context>
chip_gen: v5e
topology: v5e:2x2
jax: 0.10.0
libtpu: 0.0.40
codegen_flags: <defaults>
</compile_context>

<pallas_src>
import jax
import jax.numpy as jnp
from jax.experimental import pallas as pl
from jax.experimental.pallas import tpu as pltpu


def _round_up(x, m):
    return (x + m - 1) // m * m


def _patch_proj_kernel(a_ref, w_ref, b_ref, o_ref):
    # a_ref: (tm, K_pad) bf16 patch rows; w_ref: (K_pad, E_pad) bf16 resident
    # weight; b_ref: (1, E_pad) f32 bias; o_ref: (tm, E_pad) out dtype.
    # Single MXU GEMM with f32 accumulation + bias add, cast on store.
    acc = jnp.dot(a_ref[...], w_ref[...], preferred_element_type=jnp.float32)
    o_ref[...] = (acc + b_ref[...]).astype(o_ref.dtype)


def _vmem_plan():
    """Per-generation row-tile cap / VMEM budget (scoped limit set explicitly)."""
    try:
        kind = jax.devices()[0].device_kind.lower()
    except Exception:
        kind = ""
    if "v7" in kind:   # 64 MiB physical per TC, 32 MiB scoped default.
        return dict(tm_max=512, budget=26 << 20, limit_cap=48 << 20)
    if "v6" in kind:   # 128 MiB physical: big tiles + deeper A buffering.
        return dict(tm_max=1024, budget=80 << 20, limit_cap=112 << 20)
    if "v5" in kind:   # 128 MiB physical, 16 MiB scoped default -> raise it.
        return dict(tm_max=512, budget=48 << 20, limit_cap=100 << 20)
    return dict(tm_max=512, budget=24 << 20, limit_cap=48 << 20)   # unknown: safe


def _choose_row_tile(N, K_pad, E_pad, out_bytes, *, tm_max, budget):
    """Largest multiple-of-128 row tile (and A buffer depth) fitting the budget."""
    def usage(tm, a_bufs, const_bufs):
        # weight + bias blocks (const_bufs deep), A tile (a_bufs deep, bf16),
        # output tile (2 deep, out_bytes per element).
        return (const_bufs * (K_pad * E_pad * 2 + E_pad * 4)
                + tm * (a_bufs * K_pad * 2 + 2 * E_pad * out_bytes))

    # Multiple of 128 (bf16 min tile / MXU-full / clean 2-TC split), never
    # bigger than the row-padded problem or the per-generation cap.
    tm = max(128, min(_round_up(tm_max, 128), _round_up(N, 128)))
    while tm > 128 and usage(tm, 2, 1) > budget:
        tm -= 128
    a_bufs = 3 if usage(tm, 3, 1) <= budget else 2
    # Planned bytes assuming worst case (double-buffered consts) for the limit.
    return tm, a_bufs, usage(tm, a_bufs, 2)


def patch_proj(patches, weight_mat, bias, out_dtype):
    """patches: (N, K), weight_mat: (K, E), bias: (E,) -> (N, E) in out_dtype."""
    N, K = patches.shape
    K_w, E = weight_mat.shape
    assert K == K_w
    K_pad = _round_up(K, 128)          # lane-dense reduction dim
    E_pad = _round_up(E, 128)          # lane-dense output dim (unmasked vst)
    out_bytes = jnp.dtype(out_dtype).itemsize

    plan = _vmem_plan()
    tm, a_bufs, planned_bytes = _choose_row_tile(
        N, K_pad, E_pad, out_bytes, tm_max=plan["tm_max"], budget=plan["budget"])
    N_pad = _round_up(N, tm)           # pad rows instead of asserting divisibility

    # bf16 MXU operands; zero padding does not change the valid outputs.
    a = patches.astype(jnp.bfloat16)
    if (N_pad, K_pad) != (N, K):
        a = jnp.pad(a, ((0, N_pad - N), (0, K_pad - K)))
    w = weight_mat.astype(jnp.bfloat16)
    if (K_pad, E_pad) != (K, E):
        w = jnp.pad(w, ((0, K_pad - K), (0, E_pad - E)))
    b = jnp.pad(bias.astype(jnp.float32), (0, E_pad - E)).reshape(1, E_pad)

    grid = (N_pad // tm,)
    cost = pl.CostEstimate(
        flops=2 * N_pad * K_pad * E_pad,
        transcendentals=0,
        bytes_accessed=a.size * 2 + w.size * 2 + b.size * 4 + N_pad * E_pad * out_bytes,
    )
    # Explicit scoped-VMEM limit >= planned usage + headroom.  Matters most on
    # v5e whose default scoped limit (16 MiB) is below the planned budget.
    vmem_limit = int(min(plan["limit_cap"], max(24 << 20, int(planned_bytes * 1.3))))

    def run(tuned_buffers):
        if tuned_buffers:
            in_specs = [
                # A tile: deeper buffering on big-VMEM parts hides DMA latency.
                pl.BlockSpec((tm, K_pad), lambda i: (i, 0),
                             pipeline_mode=pl.Buffered(a_bufs)),
                # Constant-index weight / bias: single buffer (double-buffering
                # a never-changing block only wastes VMEM that tm could use).
                pl.BlockSpec((K_pad, E_pad), lambda i: (0, 0),
                             pipeline_mode=pl.Buffered(1)),
                pl.BlockSpec((1, E_pad), lambda i: (0, 0),
                             pipeline_mode=pl.Buffered(1)),
            ]
        else:
            in_specs = [
                pl.BlockSpec((tm, K_pad), lambda i: (i, 0)),
                pl.BlockSpec((K_pad, E_pad), lambda i: (0, 0)),
                pl.BlockSpec((1, E_pad), lambda i: (0, 0)),
            ]
        return pl.pallas_call(
            _patch_proj_kernel,
            out_shape=jax.ShapeDtypeStruct((N_pad, E_pad), out_dtype),
            grid_spec=pltpu.PrefetchScalarGridSpec(
                num_scalar_prefetch=0,
                grid=grid,
                in_specs=in_specs,
                out_specs=pl.BlockSpec((tm, E_pad), lambda i: (i, 0)),
            ),
            compiler_params=pltpu.CompilerParams(
                dimension_semantics=("parallel",),
                vmem_limit_bytes=vmem_limit,
            ),
            cost_estimate=cost,
        )(a, w, b)

    try:
        out = run(True)
    except Exception:
        # TODO(synk): pipeline_mode=pl.Buffered(...) unsupported on this JAX
        # build; fall back to default double-buffered blocks (same semantics).
        out = run(False)

    # Trim padding only when it exists (for typical ViT dims E % 128 == 0 and
    # N % tm == 0, so no extra pass over the token tensor is emitted).
    if E_pad != E:
        out = out[:, :E]
    if N_pad != N:
        out = out[:N]
    return out


def patch_embed_forward(x, weight, bias, patch_size, out_dtype=None):
    """x: (B, C, T, H, W). weight: (E, C, p, p). bias: (E,).

    Returns (tokens, T, W_patches) with tokens of shape (B*T, num_patches, E),
    matching the PyTorch module's forward.  out_dtype defaults to x.dtype
    (the model's activation dtype); pass jnp.bfloat16 for bf16 pipelines to
    halve the output HBM traffic.
    """
    B, C, T, H, W = x.shape
    p = patch_size
    E = weight.shape[0]
    nH, nW = H // p, W // p
    out_dtype = x.dtype if out_dtype is None else out_dtype

    # Single combined patchify transpose, done in bf16 (cast BEFORE the
    # transpose): one half-width HBM glue pass instead of two f32 passes.
    # (B,C,T,H,W) -> (B,C,T,nH,p,nW,p) -> (B,T,nH,nW,C,p,p) -> (N, C*p*p)
    xb = x.astype(jnp.bfloat16)
    xp = xb.reshape(B, C, T, nH, p, nW, p).transpose(0, 2, 3, 5, 1, 4, 6)
    patches = xp.reshape(B * T * nH * nW, C * p * p)

    # Conv weight (E, C, p, p) -> (C*p*p, E): same (C, kh, kw) flattening order.
    w_mat = weight.reshape(E, C * p * p).T

    out = patch_proj(patches, w_mat, bias, out_dtype)   # (N, E)
    tokens = out.reshape(B * T, nH * nW, E)             # (BT, num_patches, E)
    return tokens, T, nW


if __name__ == "__main__":
    # Small, module-consistent shapes: img 16x16, patch 4, in_chans 4, embed 32.
    B, C, T, H, W = 2, 4, 2, 16, 16
    p = 4
    E = 32

    key = jax.random.PRNGKey(0)
    kx, kw, kb = jax.random.split(key, 3)
    x = jax.random.normal(kx, (B, C, T, H, W), dtype=jnp.float32)
    # Deterministic synthetic Conv2d parameters (shapes from nn.Conv2d(C, E, p, p)).
    weight = jax.random.normal(kw, (E, C, p, p), dtype=jnp.float32) * 0.02
    bias = jax.random.normal(kb, (E,), dtype=jnp.float32) * 0.02

    tokens, T_out, W_out = patch_embed_forward(x, weight, bias, p)
    tokens = jax.block_until_ready(tokens)

    # Reference: same patchify + f32 matmul on bf16-rounded operands
    # (mirrors the MXU bf16-input / f32-accumulate path of the kernel).
    xr = jnp.transpose(x, (0, 2, 1, 3, 4)).reshape(B * T, C, H, W)
    xr = xr.reshape(B * T, C, H // p, p, W // p, p).transpose(0, 2, 4, 1, 3, 5)
    a_ref = xr.reshape(B * T, (H // p) * (W // p), C * p * p)
    a_bf = a_ref.astype(jnp.bfloat16).astype(jnp.float32)
    w_bf = weight.reshape(E, -1).T.astype(jnp.bfloat16).astype(jnp.float32)
    ref = a_bf @ w_bf + bias

    assert tokens.shape == (B * T, (H // p) * (W // p), E)
    assert T_out == T and W_out == W // p
    max_err = float(jnp.max(jnp.abs(tokens.astype(jnp.float32) - ref)))
    assert jnp.allclose(tokens.astype(jnp.float32), ref, atol=2e-3, rtol=2e-3), max_err
    print("KERNEL_OK")
</pallas_src>

<mosaic_0001>
module attributes {stable_mosaic.version = 11 : i64} {
  func.func @_patch_proj_kernel(%arg0: i32, %arg1: memref<128x128xbf16, #tpu.memory_space<vmem>>, %arg2: memref<128x128xbf16, #tpu.memory_space<vmem>>, %arg3: memref<1x128xf32, #tpu.memory_space<vmem>>, %arg4: memref<128x128xf32, #tpu.memory_space<vmem>>) attributes {dimension_semantics = [#tpu.dimension_semantics<parallel>], iteration_bounds = array<i64: 1>, scalar_prefetch = 0 : i64, scratch_operands = 0 : i64, tpu.core_type = #tpu.core_type<tc>, window_params = [{transform_indices = @transform_0, window_bounds = array<i64: 128, 128>}, {pipeline_mode = #tpu.pipeline_mode<synchronous>, transform_indices = @transform_1, window_bounds = array<i64: 128, 128>}, {pipeline_mode = #tpu.pipeline_mode<synchronous>, transform_indices = @transform_2, window_bounds = array<i64: 1, 128>}, {transform_indices = @transform_3, window_bounds = array<i64: 128, 128>}]} {
    %c0 = arith.constant 0 : index
    %c0_0 = arith.constant 0 : index
    %0 = vector.load %arg1[%c0, %c0_0] : memref<128x128xbf16, #tpu.memory_space<vmem>>, vector<128x128xbf16>
    %c0_1 = arith.constant 0 : index
    %c0_2 = arith.constant 0 : index
    %1 = vector.load %arg2[%c0_1, %c0_2] : memref<128x128xbf16, #tpu.memory_space<vmem>>, vector<128x128xbf16>
    %cst = arith.constant dense<0.000000e+00> : vector<128x128xf32>
    %2 = tpu.matmul %0, %1, %cst {dimension_numbers = #tpu.dot_dimension_numbers<[1], [0], [0], [1], [0, 0, 1, 1], [], []>} : vector<128x128xbf16>, vector<128x128xbf16>, vector<128x128xf32> -> vector<128x128xf32>
    %c0_3 = arith.constant 0 : index
    %c0_4 = arith.constant 0 : index
    %3 = vector.load %arg3[%c0_3, %c0_4] : memref<1x128xf32, #tpu.memory_space<vmem>>, vector<1x128xf32>
    %4 = vector.broadcast %3 : vector<1x128xf32> to vector<128x128xf32>
    %5 = arith.addf %2, %4 : vector<128x128xf32>
    %c0_5 = arith.constant 0 : index
    %c0_6 = arith.constant 0 : index
    %6 = vector.load %arg4[%c0_5, %c0_6] : memref<128x128xf32, #tpu.memory_space<vmem>>, vector<128x128xf32>
    tpu.vector_store %arg4[%c0_5, %c0_6], %5 {strides = array<i32>} : memref<128x128xf32, #tpu.memory_space<vmem>>, vector<128x128xf32>,
    return
  }
  func.func @transform_0(%arg0: i32) -> (i32, i32) {
    %c0_i32 = arith.constant 0 : i32
    %c0_i32_0 = arith.constant 0 : i32
    return %arg0, %c0_i32 : i32, i32
  }
  func.func @transform_1(%arg0: i32) -> (i32, i32) {
    %c0_i32 = arith.constant 0 : i32
    %c0_i32_0 = arith.constant 0 : i32
    %c0_i32_1 = arith.constant 0 : i32
    return %c0_i32, %c0_i32_0 : i32, i32
  }
  func.func @transform_2(%arg0: i32) -> (i32, i32) {
    %c0_i32 = arith.constant 0 : i32
    %c0_i32_0 = arith.constant 0 : i32
    %c0_i32_1 = arith.constant 0 : i32
    return %c0_i32, %c0_i32_0 : i32, i32
  }
  func.func @transform_3(%arg0: i32) -> (i32, i32) {
    %c0_i32 = arith.constant 0 : i32
    %c0_i32_0 = arith.constant 0 : i32
    return %arg0, %c0_i32 : i32, i32
  }
}

</mosaic_0001>

<llo_original>
// kernel: tpu_custom_call.1
$region0: #{tpu_custom_call.1}
  #allocation0 [shape = 'u32[]', space=smem, size = 0x4, offset = 0x4, fixed_abs, tag = 'smem constant byte address 0x4 - core index']
  #allocation1 [shape = 'u32[72,128]{1,0:T(1,128)}', space=vmem, size = 0x9000, scoped, tag = 'internal scratch']
  %s0 = inlined_call_operand.hbm [shape: bf16[128,128], index: 0, kind: input, shape index: {}]
  %s1 = inlined_call_operand.hbm [shape: bf16[128,128], index: 1, kind: input, shape index: {}]
  %s2 = inlined_call_operand.vmem [shape: f32[1,128], index: 2, kind: input, shape index: {}]
  %s3 = inlined_call_operand.hbm [shape: f32[128,128], index: 3, kind: output, shape index: {}]
  %s4 = sld [smem:[#allocation0]]
  $region30: #{tpu_custom_call.1} parent=0
    _
  %s6 = ssub.s32 1, %s4
  %s7 = scalar_select 0, %s6, %s4
  $region1: #{tpu_custom_call.1} parent=0
    #allocation2 [shape = 'u8[32768]{0}', space=vmem, size = 0x8000, scoped, tag = 'input window, operand 0, single buffered']
    #allocation3 [shape = 's32[1]{0}', space=sflag, size = 0x4, scoped, tag = 'scoped memory for tpu_custom_call.1']
    #allocation4 [shape = 's32[1]{0}', space=sflag, size = 0x4, scoped, tag = 'scoped memory for tpu_custom_call.1']
    #allocation5 [shape = 'u8[32768]{0}', space=vmem, size = 0x8000, scoped, tag = 'input window, operand 1, single buffered']
    #allocation6 [shape = 's32[1]{0}', space=sflag, size = 0x4, scoped, tag = 'scoped memory for tpu_custom_call.1']
    #allocation7 [shape = 'u8[65536]{0}', space=vmem, size = 0x10000, scoped, tag = 'output window, operand 0, single buffered']
    %8 = vsyncpa [#allocation3], 0
    %9 = vsyncpa [#allocation6], 0
    %10 = vsyncpa [#allocation4], 0
    // Predicated region
    $region2: #{tpu_custom_call.1} parent=1 // pred_check
      _
    $region3: #{tpu_custom_call.1} parent=1 // pred_check_branch
      %12 = sbr.rel (0) target = $region5
    $region4: #{tpu_custom_call.1} parent=1 // pred_region
      %14 = vsyncadd [#allocation3], 0
      %s15 = sshll.u32 %s0, 4
      %s16 = int_to_ptr.hbm [resolvable:$true] %s15
      %s17 = sshll.u32 [#allocation2], 4
      %s18 = int_to_ptr.vmem [resolvable:$true] %s17
      %23 = dma.hbm_to_vmem [thread:$0]  %s16, 1024, %s18, [#allocation3], 64, 64, 4
    $region5: #{tpu_custom_call.1} parent=1 // pred_fallthru
      _
    // Predicated region
    $region6: #{tpu_custom_call.1} parent=1 // pred_check
      _
    $region7: #{tpu_custom_call.1} parent=1 // pred_check_branch
      %25 = sbr.rel (0) target = $region9
    $region8: #{tpu_custom_call.1} parent=1 // pred_region
      %27 = vsyncadd [#allocation6], 0
      %s28 = sshll.u32 %s1, 4
      %s29 = int_to_ptr.hbm [resolvable:$true] %s28
      %s30 = sshll.u32 [#allocation5], 4
      %s31 = int_to_ptr.vmem [resolvable:$true] %s30
      %36 = dma.hbm_to_vmem [thread:$0]  %s29, 1024, %s31, [#allocation6], 64, 64, 4
    $region9: #{tpu_custom_call.1} parent=1 // pred_fallthru
      _
    // Predicated region
    $region10: #{tpu_custom_call.1} parent=1 // pred_check
      _
    $region11: #{tpu_custom_call.1} parent=1 // pred_check_branch
      %38 = sbr.rel (0) target = $region13
    $region12: #{tpu_custom_call.1} parent=1 // pred_region
      _
    $region13: #{tpu_custom_call.1} parent=1 // pred_fallthru
      _
    // Predicated region
    $region14: #{tpu_custom_call.1} parent=1 // pred_check
      _
    $region15: #{tpu_custom_call.1} parent=1 // pred_check_branch
      %40 = sbr.rel (0) target = $region17
    $region16: #{tpu_custom_call.1} parent=1 // pred_region
      %42 = dma.done [#allocation3], 1024
    $region17: #{tpu_custom_call.1} parent=1 // pred_fallthru
      _
    // Predicated region
    $region18: #{tpu_custom_call.1} parent=1 // pred_check
      _
    $region19: #{tpu_custom_call.1} parent=1 // pred_check_branch
      %44 = sbr.rel (0) target = $region21
    $region20: #{tpu_custom_call.1} parent=1 // pred_region
      %46 = dma.done [#allocation6], 1024
    $region21: #{tpu_custom_call.1} parent=1 // pred_fallthru
      _
    %v47 = vld [vmem:[#allocation2] sm:$0xf]
    %v48 = vld [vmem:[#allocation2 + $0x4] sm:$0xf]
    %v49 = vld [vmem:[#allocation2 + $0x8] sm:$0xf]
    %v50 = vld [vmem:[#allocation2 + $0xc] sm:$0xf]
    %v51 = vld [vmem:[#allocation2 + $0x10] sm:$0xf]
    %v52 = vld [vmem:[#allocation2 + $0x14] sm:$0xf]
    %v53 = vld [vmem:[#allocation2 + $0x18] sm:$0xf]
    %v54 = vld [vmem:[#allocation2 + $0x1c] sm:$0xf]
    %v55 = vld [vmem:[#allocation2 + $0x20] sm:$0xf]
    %v56 = vld [vmem:[#allocation2 + $0x24] sm:$0xf]
    %v57 = vld [vmem:[#allocation2 + $0x28] sm:$0xf]
    %v58 = vld [vmem:[#allocation2 + $0x2c] sm:$0xf]
    %v59 = vld [vmem:[#allocation2 + $0x30] sm:$0xf]
    %v60 = vld [vmem:[#allocation2 + $0x34] sm:$0xf]
    %v61 = vld [vmem:[#allocation2 + $0x38] sm:$0xf]
    %v62 = vld [vmem:[#allocation2 + $0x3c] sm:$0xf]
    %v63 = vld [vmem:[#allocation5] sm:$0xf]
    %v64 = vld [vmem:[#allocation5 + $0x4] sm:$0xf]
    %v65 = vld [vmem:[#allocation5 + $0x8] sm:$0xf]
    %v66 = vld [vmem:[#allocation5 + $0xc] sm:$0xf]
    %v67 = vld [vmem:[#allocation5 + $0x10] sm:$0xf]
    %v68 = vld [vmem:[#allocation5 + $0x14] sm:$0xf]
    %v69 = vld [vmem:[#allocation5 + $0x18] sm:$0xf]
    %v70 = vld [vmem:[#allocation5 + $0x1c] sm:$0xf]
    %v71 = vld [vmem:[#allocation5 + $0x20] sm:$0xf]
    %v72 = vld [vmem:[#allocation5 + $0x24] sm:$0xf]
    %v73 = vld [vmem:[#allocation5 + $0x28] sm:$0xf]
    %v74 = vld [vmem:[#allocation5 + $0x2c] sm:$0xf]
    %v75 = vld [vmem:[#allocation5 + $0x30] sm:$0xf]
    %v76 = vld [vmem:[#allocation5 + $0x34] sm:$0xf]
    %v77 = vld [vmem:[#allocation5 + $0x38] sm:$0xf]
    %v78 = vld [vmem:[#allocation5 + $0x3c] sm:$0xf]
    %v79 = vld [vmem:[%s2] sm:$0x1]
    %v81 = vperm.slane %v79, 0
    %v99 = vunpack.c.l.b16 %v47
    %v100 = vunpack.c.l.b16 %v48
    %v101 = vunpack.c.l.b16 %v49
    %v102 = vunpack.c.l.b16 %v50
    %v103 = vunpack.c.l.b16 %v51
    %v104 = vunpack.c.l.b16 %v52
    %v105 = vunpack.c.l.b16 %v53
    %v106 = vunpack.c.l.b16 %v54
    %v107 = vunpack.c.l.b16 %v55
    %v108 = vunpack.c.l.b16 %v56
    %v109 = vunpack.c.l.b16 %v57
    %v110 = vunpack.c.l.b16 %v58
    %v111 = vunpack.c.l.b16 %v59
    %v112 = vunpack.c.l.b16 %v60
    %v113 = vunpack.c.l.b16 %v61
    %v114 = vunpack.c.l.b16 %v62
    %v115 = vpack.c.b16 %v100, %v99
    %v116 = vpack.c.b16 %v102, %v101
    %v117 = vpack.c.b16 %v104, %v103
    %v118 = vpack.c.b16 %v106, %v105
    %v119 = vpack.c.b16 %v108, %v107
    %v120 = vpack.c.b16 %v110, %v109
    %v121 = vpack.c.b16 %v112, %v111
    %v122 = vpack.c.b16 %v114, %v113
    %v147 = vunpack.c.l.b16 %v63
    %v148 = vunpack.c.l.b16 %v64
    %v149 = vunpack.c.l.b16 %v65
    %v150 = vunpack.c.l.b16 %v66
    %v151 = vunpack.c.l.b16 %v67
    %v152 = vunpack.c.l.b16 %v68
    %v153 = vunpack.c.l.b16 %v69
    %v154 = vunpack.c.l.b16 %v70
    %v155 = vunpack.c.l.b16 %v71
    %v156 = vunpack.c.l.b16 %v72
    %v157 = vunpack.c.l.b16 %v73
    %v158 = vunpack.c.l.b16 %v74
    %v159 = vunpack.c.l.b16 %v75
    %v160 = vunpack.c.l.b16 %v76
    %v161 = vunpack.c.l.b16 %v77
    %v162 = vunpack.c.l.b16 %v78
    %v163 = vpack.c.b16 %v148, %v147
    %v164 = vpack.c.b16 %v150, %v149
    %v165 = vpack.c.b16 %v152, %v151
    %v166 = vpack.c.b16 %v154, %v153
    %v167 = vpack.c.b16 %v156, %v155
    %v168 = vpack.c.b16 %v158, %v157
    %v169 = vpack.c.b16 %v160, %v159
    %v170 = vpack.c.b16 %v162, %v161
    %179 = vmatpush.bf16.msra.mxu0 %v170
    %180 = vmatpush.bf16.msra.mxu0 %v169
    %181 = vmatpush.bf16.msra.mxu0 %v168
    %182 = vmatpush.bf16.msra.mxu0 %v167
    %183 = vmatpush.bf16.msra.mxu0 %v166
    %184 = vmatpush.bf16.msra.mxu0 %v165
    %185 = vmatpush.bf16.msra.mxu0 %v164
    %186 = vmatpush.bf16.msra.mxu0 %v163
    %187 = vmatmul.bf16.gmra.mxu0 %v115
    %v188 = vpop.f32.mrf.mxu0
    %v189 = vadd.f32 %v81, %v188
    %v190 = vpop.f32.mrf.mxu0
    %v191 = vadd.f32 %v81, %v190
    %192 = vmatmul.bf16.gmra.mxu0 %v116
    %v193 = vpop.f32.mrf.mxu0
    %v194 = vadd.f32 %v81, %v193
    %v195 = vpop.f32.mrf.mxu0
    %v196 = vadd.f32 %v81, %v195
    %197 = vmatmul.bf16.gmra.mxu0 %v117
    %v198 = vpop.f32.mrf.mxu0
    %v199 = vadd.f32 %v81, %v198
    %v200 = vpop.f32.mrf.mxu0
    %v201 = vadd.f32 %v81, %v200
    %202 = vmatmul.bf16.gmra.mxu0 %v118
    %v203 = vpop.f32.mrf.mxu0
    %v204 = vadd.f32 %v81, %v203
    %v205 = vpop.f32.mrf.mxu0
    %v206 = vadd.f32 %v81, %v205
    %207 = vmatmul.bf16.gmra.mxu0 %v119
    %v208 = vpop.f32.mrf.mxu0
    %v209 = vadd.f32 %v81, %v208
    %v210 = vpop.f32.mrf.mxu0
    %v211 = vadd.f32 %v81, %v210
    %212 = vmatmul.bf16.gmra.mxu0 %v120
    %v213 = vpop.f32.mrf.mxu0
    %v214 = vadd.f32 %v81, %v213
    %v215 = vpop.f32.mrf.mxu0
    %v216 = vadd.f32 %v81, %v215
    %217 = vmatmul.bf16.gmra.mxu0 %v121
    %v218 = vpop.f32.mrf.mxu0
    %v219 = vadd.f32 %v81, %v218
    %v220 = vpop.f32.mrf.mxu0
    %v221 = vadd.f32 %v81, %v220
    %222 = vmatmul.bf16.gmra.mxu0 %v122
    %v223 = vpop.f32.mrf.mxu0
    %v224 = vadd.f32 %v81, %v223
    %v225 = vpop.f32.mrf.mxu0
    %v226 = vadd.f32 %v81, %v225
    %227 = vdwg.mxu0
    %228 = vst [vmem:[#allocation7] sm:$0xff] %v189
    %229 = vst [vmem:[#allocation7 + $0x8] sm:$0xff] %v191
    %230 = vst [vmem:[#allocation7 + $0x10] sm:$0xff] %v194
    %231 = vst [vmem:[#allocation7 + $0x18] sm:$0xff] %v196
    %232 = vst [vmem:[#allocation7 + $0x20] sm:$0xff] %v199
    %233 = vst [vmem:[#allocation7 + $0x28] sm:$0xff] %v201
    %234 = vst [vmem:[#allocation7 + $0x30] sm:$0xff] %v204
    %235 = vst [vmem:[#allocation7 + $0x38] sm:$0xff] %v206
    %236 = vst [vmem:[#allocation7 + $0x40] sm:$0xff] %v209
    %237 = vst [vmem:[#allocation7 + $0x48] sm:$0xff] %v211
    %238 = vst [vmem:[#allocation7 + $0x50] sm:$0xff] %v214
    %239 = vst [vmem:[#allocation7 + $0x58] sm:$0xff] %v216
    %240 = vst [vmem:[#allocation7 + $0x60] sm:$0xff] %v219
    %241 = vst [vmem:[#allocation7 + $0x68] sm:$0xff] %v221
    %242 = vst [vmem:[#allocation7 + $0x70] sm:$0xff] %v224
    %243 = vst [vmem:[#allocation7 + $0x78] sm:$0xff] %v226
    // Predicated region
    $region22: #{tpu_custom_call.1} parent=1 // pred_check
      _
    $region23: #{tpu_custom_call.1} parent=1 // pred_check_branch
      %245 = sbr.rel (0) target = $region25
    $region24: #{tpu_custom_call.1} parent=1 // pred_region
      %247 = vsyncadd [#allocation4], 0
      %s248 = sshll.u32 [#allocation7], 4
      %s249 = int_to_ptr.vmem [resolvable:$true] %s248
      %s250 = sshll.u32 %s3, 4
      %s251 = int_to_ptr.hbm [resolvable:$true] %s250
      %256 = dma.vmem_to_hbm [thread:$0]  %s249, 2048, %s251, [#allocation4], 128, 128, 8
    $region25: #{tpu_custom_call.1} parent=1 // pred_fallthru
      _
    // Predicated region
    $region26: #{tpu_custom_call.1} parent=1 // pred_check
      _
    $region27: #{tpu_custom_call.1} parent=1 // pred_check_branch
      %258 = sbr.rel (0) target = $region29
    $region28: #{tpu_custom_call.1} parent=1 // pred_region
      %260 = dma.done [#allocation4], 2048
    $region29: #{tpu_custom_call.1} parent=1 // pred_fallthru
      _
    %261 = vsyncpa [#allocation3], 1
    %262 = vsyncpa [#allocation6], 1
    %263 = vsyncpa [#allocation4], 1

</llo_original>
